<compile_context>
chip_gen: v6e
topology: v6e:2x2x1
jax: 0.10.0
libtpu: 0.0.40
codegen_flags: <defaults>
</compile_context>

<pallas_src>
import jax
import jax.numpy as jnp
from jax.experimental import pallas as pl
from jax.experimental.pallas import tpu as pltpu


def _residual_1x1conv_kernel(x_ref, w_ref, b_ref, o_ref):
    # x_ref: (TB, C, TN)    channels on sublanes, pixels on lanes
    # w_ref: (TCO, C)       1x1-conv weight rows with the residual identity folded in
    # b_ref: (TCO, 1)       bias (f32)
    # o_ref: (TB, TCO, TN)
    w = w_ref[...]
    b = b_ref[...]
    # TB is small and static: unrolled plain 2-D MXU matmuls, f32 accumulation,
    # lane-dense stores (no batched-dot transposes).
    for bb in range(x_ref.shape[0]):
        acc = jnp.dot(w, x_ref[bb], preferred_element_type=jnp.float32)
        o_ref[bb] = (acc + b).astype(o_ref.dtype)


def residual_forward(x_nchw, w, b, *, tile_n=None, tile_co=None, tile_b=None):
    """Residual(fn=Conv2d(C, C, kernel_size=1)) forward.

    x_nchw: [B, C, H, W]
    w:      [C, C]   (out_channels, in_channels) 1x1 conv weight
    b:      [C]      bias
    returns [B, C, H, W]
    """
    B, C, H, W = x_nchw.shape
    HW = H * W
    x3 = x_nchw.reshape(B, C, HW)  # free reshape: NCHW stays native, no transpose

    itemsize = jnp.dtype(x_nchw.dtype).itemsize
    w_itemsize = jnp.dtype(w.dtype).itemsize
    LANE = 128

    # ---- generation-aware VMEM budget -------------------------------------
    try:
        vmem_cap = int(pltpu.get_tpu_info().vmem_capacity_bytes)
    except Exception:
        vmem_cap = 64 * 1024 * 1024  # conservative fallback (v7x per-TC VMEM)
    # Per x block (double-buffered): ~8 MiB on v7x (64 MiB), ~16 MiB on v5e/v6e.
    x_budget = min(16 * 1024 * 1024, vmem_cap // 8)

    # ---- output-channel tiling: only when the weight threatens VMEM -------
    if tile_co is None:
        tile_co = C
        if 2 * C * C * w_itemsize > vmem_cap // 4:  # double-buffered weight too big
            # largest power-of-two multiple of 128 (MXU-friendly) dividing C that fits
            t, best = 128, None
            while t < C:
                if C % t == 0 and 2 * t * C * w_itemsize <= vmem_cap // 4:
                    best = t
                t *= 2
            tile_co = best if best is not None else C
    assert C % tile_co == 0, "tile_co must divide C"
    assert tile_co == C or tile_co % 8 == 0, "tile_co must be a multiple of 8 (or == C)"

    # ---- pixel tiling -------------------------------------------------------
    if tile_n is None:
        budget_lanes = max(LANE, x_budget // max(1, C * itemsize))
        if HW <= budget_lanes:
            tile_n = HW  # block == full array dim: always a legal block shape
        else:
            tile_n = (budget_lanes // LANE) * LANE  # multiple of 128 lanes
    assert tile_n == HW or tile_n % LANE == 0, "tile_n must be a multiple of 128 or HW"

    # ---- batch tiling (only pays off when one image fits in a single tile) --
    if tile_b is None:
        tile_b = 1
        if tile_n == HW:
            max_b = max(1, x_budget // max(1, C * HW * itemsize))
            for d in range(min(B, max_b), 0, -1):
                if B % d == 0:
                    tile_b = d
                    break
    assert B % tile_b == 0, "tile_b must divide B"

    n_bi = B // tile_b
    n_j = pl.cdiv(HW, tile_n)   # partial last tile: Pallas clamps the block; the
    n_co = C // tile_co         # op is lane-local, OOB lanes are dropped on writeback
    # co innermost: x's block index (bi, 0, j) is constant across consecutive co
    # steps, so the big x block is fetched from HBM exactly once even when n_co > 1.
    grid = (n_bi, n_j, n_co)

    # Fold the residual into the matmul: (W + I) @ x + b == W @ x + b + x.
    w_eff = w + jnp.eye(C, dtype=w.dtype)
    b2 = b.astype(jnp.float32).reshape(C, 1)

    # Explicit VMEM budget (everything double-buffered by the pipeline).
    x_blk = tile_b * C * tile_n * itemsize
    o_blk = tile_b * tile_co * tile_n * itemsize
    w_blk = tile_co * C * w_itemsize
    b_blk = tile_co * 4
    need = 2 * (x_blk + o_blk + w_blk + b_blk)
    vmem_limit = int(min(vmem_cap - (4 << 20), need + (2 << 20)))
    vmem_limit = max(vmem_limit, 16 << 20)

    cost = pl.CostEstimate(
        flops=2 * B * C * C * HW,
        transcendentals=0,
        bytes_accessed=int(
            2 * B * C * HW * itemsize                            # x read once, out written once
            + (n_bi * n_j if n_co > 1 else 1) * C * C * w_itemsize
            + C * 4
        ),
    )

    out3 = pl.pallas_call(
        _residual_1x1conv_kernel,
        out_shape=jax.ShapeDtypeStruct((B, C, HW), x_nchw.dtype),
        grid_spec=pltpu.PrefetchScalarGridSpec(
            num_scalar_prefetch=0,
            grid=grid,
            in_specs=[
                # full channel column of this (batch-tile, pixel-tile); constant over co
                pl.BlockSpec((tile_b, C, tile_n), lambda bi, j, co: (bi, 0, j)),
                # weight rows for this output-channel tile (constant block when n_co == 1)
                pl.BlockSpec((tile_co, C), lambda bi, j, co: (co, 0)),
                pl.BlockSpec((tile_co, 1), lambda bi, j, co: (co, 0)),
            ],
            out_specs=pl.BlockSpec(
                (tile_b, tile_co, tile_n), lambda bi, j, co: (bi, co, j)
            ),
        ),
        compiler_params=pltpu.CompilerParams(
            dimension_semantics=("parallel", "parallel", "arbitrary"),
            vmem_limit_bytes=vmem_limit,
        ),
        cost_estimate=cost,
    )(x3, w_eff, b2)

    return out3.reshape(B, C, H, W)  # free reshape back to NCHW


if __name__ == "__main__":
    key = jax.random.PRNGKey(0)
    kx, kw, kb = jax.random.split(key, 3)

    B, C, H, W = 2, 8, 16, 16  # small NCHW input
    x = jax.random.normal(kx, (B, C, H, W), dtype=jnp.float32)
    w = jax.random.normal(kw, (C, C), dtype=jnp.float32) * 0.1  # fn = 1x1 conv
    b = jax.random.normal(kb, (C,), dtype=jnp.float32) * 0.1

    out = jax.block_until_ready(residual_forward(x, w, b))

    # reference: fn(x) + x with fn = 1x1 conv, all in plain JAX
    ref = jnp.einsum("oc,bchw->bohw", w, x) + b.reshape(1, C, 1, 1) + x
    assert out.shape == x.shape and out.dtype == x.dtype
    assert jnp.allclose(out, ref, atol=1e-5, rtol=1e-5)

    print("KERNEL_OK")
</pallas_src>

<mosaic_0001>
module attributes {stable_mosaic.version = 11 : i64} {
  func.func @_residual_1x1conv_kernel(%arg0: i32, %arg1: i32, %arg2: i32, %arg3: memref<2x8x256xf32, #tpu.memory_space<vmem>>, %arg4: memref<8x8xf32, #tpu.memory_space<vmem>>, %arg5: memref<8x1xf32, #tpu.memory_space<vmem>>, %arg6: memref<2x8x256xf32, #tpu.memory_space<vmem>>) attributes {dimension_semantics = [#tpu.dimension_semantics<parallel>, #tpu.dimension_semantics<parallel>, #tpu.dimension_semantics<arbitrary>], iteration_bounds = array<i64: 1, 1, 1>, scalar_prefetch = 0 : i64, scratch_operands = 0 : i64, tpu.core_type = #tpu.core_type<tc>, window_params = [{transform_indices = @transform_0, window_bounds = array<i64: 2, 8, 256>}, {transform_indices = @transform_1, window_bounds = array<i64: 8, 8>}, {transform_indices = @transform_2, window_bounds = array<i64: 8, 1>}, {transform_indices = @transform_3, window_bounds = array<i64: 2, 8, 256>}]} {
    %c0 = arith.constant 0 : index
    %c0_0 = arith.constant 0 : index
    %0 = vector.load %arg4[%c0, %c0_0] : memref<8x8xf32, #tpu.memory_space<vmem>>, vector<8x8xf32>
    %c0_1 = arith.constant 0 : index
    %c0_2 = arith.constant 0 : index
    %1 = vector.load %arg5[%c0_1, %c0_2] : memref<8x1xf32, #tpu.memory_space<vmem>>, vector<8x1xf32>
    %c0_3 = arith.constant 0 : index
    %c0_4 = arith.constant 0 : index
    %c0_5 = arith.constant 0 : index
    %2 = vector.load %arg3[%c0_3, %c0_4, %c0_5] : memref<2x8x256xf32, #tpu.memory_space<vmem>>, vector<1x8x256xf32>
    %3 = vector.shape_cast %2 : vector<1x8x256xf32> to vector<8x256xf32>
    %cst = arith.constant dense<0.000000e+00> : vector<8x256xf32>
    %4 = tpu.matmul %0, %3, %cst {dimension_numbers = #tpu.dot_dimension_numbers<[1], [0], [0], [1], [0, 0, 1, 1], [], []>} : vector<8x8xf32>, vector<8x256xf32>, vector<8x256xf32> -> vector<8x256xf32>
    %5 = vector.broadcast %1 : vector<8x1xf32> to vector<8x256xf32>
    %6 = arith.addf %4, %5 : vector<8x256xf32>
    %c0_6 = arith.constant 0 : index
    %c0_7 = arith.constant 0 : index
    %c0_8 = arith.constant 0 : index
    %7 = vector.load %arg6[%c0_6, %c0_7, %c0_8] : memref<2x8x256xf32, #tpu.memory_space<vmem>>, vector<1x8x256xf32>
    %8 = vector.shape_cast %7 : vector<1x8x256xf32> to vector<8x256xf32>
    %9 = vector.shape_cast %6 : vector<8x256xf32> to vector<1x8x256xf32>
    tpu.vector_store %arg6[%c0_6, %c0_7, %c0_8], %9 {strides = array<i32>} : memref<2x8x256xf32, #tpu.memory_space<vmem>>, vector<1x8x256xf32>,
    %c1 = arith.constant 1 : index
    %c0_9 = arith.constant 0 : index
    %c0_10 = arith.constant 0 : index
    %10 = vector.load %arg3[%c1, %c0_9, %c0_10] : memref<2x8x256xf32, #tpu.memory_space<vmem>>, vector<1x8x256xf32>
    %11 = vector.shape_cast %10 : vector<1x8x256xf32> to vector<8x256xf32>
    %cst_11 = arith.constant dense<0.000000e+00> : vector<8x256xf32>
    %12 = tpu.matmul %0, %11, %cst_11 {dimension_numbers = #tpu.dot_dimension_numbers<[1], [0], [0], [1], [0, 0, 1, 1], [], []>} : vector<8x8xf32>, vector<8x256xf32>, vector<8x256xf32> -> vector<8x256xf32>
    %13 = vector.broadcast %1 : vector<8x1xf32> to vector<8x256xf32>
    %14 = arith.addf %12, %13 : vector<8x256xf32>
    %c1_12 = arith.constant 1 : index
    %c0_13 = arith.constant 0 : index
    %c0_14 = arith.constant 0 : index
    %15 = vector.load %arg6[%c1_12, %c0_13, %c0_14] : memref<2x8x256xf32, #tpu.memory_space<vmem>>, vector<1x8x256xf32>
    %16 = vector.shape_cast %15 : vector<1x8x256xf32> to vector<8x256xf32>
    %17 = vector.shape_cast %14 : vector<8x256xf32> to vector<1x8x256xf32>
    tpu.vector_store %arg6[%c1_12, %c0_13, %c0_14], %17 {strides = array<i32>} : memref<2x8x256xf32, #tpu.memory_space<vmem>>, vector<1x8x256xf32>,
    return
  }
  func.func @transform_0(%arg0: i32, %arg1: i32, %arg2: i32) -> (i32, i32, i32) {
    %c0_i32 = arith.constant 0 : i32
    %c0_i32_0 = arith.constant 0 : i32
    return %arg0, %c0_i32, %arg1 : i32, i32, i32
  }
  func.func @transform_1(%arg0: i32, %arg1: i32, %arg2: i32) -> (i32, i32) {
    %c0_i32 = arith.constant 0 : i32
    %c0_i32_0 = arith.constant 0 : i32
    return %arg2, %c0_i32 : i32, i32
  }
  func.func @transform_2(%arg0: i32, %arg1: i32, %arg2: i32) -> (i32, i32) {
    %c0_i32 = arith.constant 0 : i32
    %c0_i32_0 = arith.constant 0 : i32
    return %arg2, %c0_i32 : i32, i32
  }
  func.func @transform_3(%arg0: i32, %arg1: i32, %arg2: i32) -> (i32, i32, i32) {
    %c0_i32 = arith.constant 0 : i32
    return %arg0, %arg2, %arg1 : i32, i32, i32
  }
}

</mosaic_0001>

<llo_original>
// kernel: tpu_custom_call.1
$region0: #{tpu_custom_call.1}
  #allocation0 [shape = 'u32[]', space=smem, size = 0x4, offset = 0x4, fixed_abs, tag = 'smem constant byte address 0x4 - core index']
  #allocation1 [shape = 'u32[144,128]{1,0:T(1,128)}', space=vmem, size = 0x12000, scoped, tag = 'internal scratch']
  %s0 = inlined_call_operand.hbm [shape: f32[2,8,256], index: 0, kind: input, shape index: {}]
  %s1 = inlined_call_operand.vmem [shape: f32[8,8], index: 1, kind: input, shape index: {}]
  %s2 = inlined_call_operand.vmem [shape: f32[8,1], index: 2, kind: input, shape index: {}]
  %s3 = inlined_call_operand.hbm [shape: f32[2,8,256], index: 3, kind: output, shape index: {}]
  %s4 = sld [smem:[#allocation0]]
  $region26: #{tpu_custom_call.1} parent=0
    _
  %s6 = ssub.s32 1, %s4
  %s7 = scalar_select 0, %s6, %s4
  $region1: #{tpu_custom_call.1} parent=0
    #allocation2 [shape = 'u8[16384]{0}', space=vmem, size = 0x4000, scoped, tag = 'input window, operand 0, single buffered']
    #allocation3 [shape = 's32[1]{0}', space=sflag, size = 0x4, scoped, tag = 'scoped memory for tpu_custom_call.1']
    #allocation4 [shape = 's32[1]{0}', space=sflag, size = 0x4, scoped, tag = 'scoped memory for tpu_custom_call.1']
    #allocation5 [shape = 'u8[16384]{0}', space=vmem, size = 0x4000, scoped, tag = 'output window, operand 0, single buffered']
    %8 = vsyncpa [#allocation3], 0
    %9 = vsyncpa [#allocation4], 0
    // Predicated region
    $region2: #{tpu_custom_call.1} parent=1 // pred_check
      _
    $region3: #{tpu_custom_call.1} parent=1 // pred_check_branch
      %11 = sbr.rel (0) target = $region5
    $region4: #{tpu_custom_call.1} parent=1 // pred_region
      %s13 = ssub.s32 512, 512
      %14 = vsyncadd [#allocation3], %s13
      %s15 = sshll.u32 [#allocation2], 4
      %s16 = int_to_ptr.vmem [resolvable:$true] %s15
      %21 = dma.hbm_to_vmem [thread:$0]  %s0, 512, %s16, [#allocation3], 256, 256, 16
    $region5: #{tpu_custom_call.1} parent=1 // pred_fallthru
      _
    // Predicated region
    $region6: #{tpu_custom_call.1} parent=1 // pred_check
      _
    $region7: #{tpu_custom_call.1} parent=1 // pred_check_branch
      %23 = sbr.rel (0) target = $region9
    $region8: #{tpu_custom_call.1} parent=1 // pred_region
      _
    $region9: #{tpu_custom_call.1} parent=1 // pred_fallthru
      _
    // Predicated region
    $region10: #{tpu_custom_call.1} parent=1 // pred_check
      _
    $region11: #{tpu_custom_call.1} parent=1 // pred_check_branch
      %25 = sbr.rel (0) target = $region13
    $region12: #{tpu_custom_call.1} parent=1 // pred_region
      _
    $region13: #{tpu_custom_call.1} parent=1 // pred_fallthru
      _
    // Predicated region
    $region14: #{tpu_custom_call.1} parent=1 // pred_check
      _
    $region15: #{tpu_custom_call.1} parent=1 // pred_check_branch
      %27 = sbr.rel (0) target = $region17
    $region16: #{tpu_custom_call.1} parent=1 // pred_region
      %28 = dma.done [#allocation3], 512
    $region17: #{tpu_custom_call.1} parent=1 // pred_fallthru
      _
    %v29 = vld [vmem:[%s1] sm:$0xff]
    %v30 = vld [vmem:[%s2] sm:$0xff]
    %v31 = vld [vmem:[#allocation2] sm:$0xff]
    %v32 = vld [vmem:[#allocation2 + $0x8] sm:$0xff]
    %34 = vset.pattern.permute.xlu0 0
    %35 = vperm.xlu0 %34, %v30
    %v36 = vpop.permute.xlu0 %35
    %vm38 = vcmask 64512
    %v40 = vsel %vm38, %v29, 0
    %42 = vmatprep.subr.mxu0 0.0
    %43 = vmatpush1.msra.mxu0 0.0
    %44 = vmatprep.subr.mxu0 0.0
    %45 = vmatpush1.msra.mxu0 0.0
    %46 = vmatprep.subr.mxu0 0.0
    %47 = vmatpush1.msra.mxu0 0.0
    %48 = vmatprep.subr.mxu0 0.0
    %49 = vmatpush1.msra.mxu0 0.0
    %50 = vmatprep.subr.mxu0 0.0
    %51 = vmatpush1.msra.mxu0 0.0
    %52 = vmatprep.subr.mxu0 0.0
    %53 = vmatpush1.msra.mxu0 0.0
    %54 = vmatprep.subr.mxu0 0.0
    %55 = vmatpush1.msra.mxu0 0.0
    %56 = vmatprep.subr.mxu0 0.0
    %57 = vmatpush1.msra.mxu0 0.0
    %58 = vmatprep.subr.mxu0 0.0
    %59 = vmatpush1.msra.mxu0 0.0
    %60 = vmatprep.subr.mxu0 0.0
    %61 = vmatpush1.msra.mxu0 0.0
    %62 = vmatprep.subr.mxu0 0.0
    %63 = vmatpush1.msra.mxu0 0.0
    %64 = vmatprep.subr.mxu0 0.0
    %65 = vmatpush1.msra.mxu0 0.0
    %66 = vmatprep.subr.mxu0 0.0
    %67 = vmatpush1.msra.mxu0 0.0
    %68 = vmatprep.subr.mxu0 0.0
    %69 = vmatpush1.msra.mxu0 0.0
    %70 = vmatprep.subr.mxu0 0.0
    %71 = vmatpush1.msra.mxu0 0.0
    %72 = vmatprep.subr.mxu0 %v32
    %73 = vmatpush1.msra.mxu0 %v31
    %74 = vmatprep.subr.mxu0 0.0
    %75 = vmatpush2.msra.mxu0 0.0
    %76 = vmatprep.subr.mxu0 0.0
    %77 = vmatpush2.msra.mxu0 0.0
    %78 = vmatprep.subr.mxu0 0.0
    %79 = vmatpush2.msra.mxu0 0.0
    %80 = vmatprep.subr.mxu0 0.0
    %81 = vmatpush2.msra.mxu0 0.0
    %82 = vmatprep.subr.mxu0 0.0
    %83 = vmatpush2.msra.mxu0 0.0
    %84 = vmatprep.subr.mxu0 0.0
    %85 = vmatpush2.msra.mxu0 0.0
    %86 = vmatprep.subr.mxu0 0.0
    %87 = vmatpush2.msra.mxu0 0.0
    %88 = vmatprep.subr.mxu0 0.0
    %89 = vmatpush2.msra.mxu0 0.0
    %90 = vmatprep.subr.mxu0 0.0
    %91 = vmatpush2.msra.mxu0 0.0
    %92 = vmatprep.subr.mxu0 0.0
    %93 = vmatpush2.msra.mxu0 0.0
    %94 = vmatprep.subr.mxu0 0.0
    %95 = vmatpush2.msra.mxu0 0.0
    %96 = vmatprep.subr.mxu0 0.0
    %97 = vmatpush2.msra.mxu0 0.0
    %98 = vmatprep.subr.mxu0 0.0
    %99 = vmatpush2.msra.mxu0 0.0
    %100 = vmatprep.subr.mxu0 0.0
    %101 = vmatpush2.msra.mxu0 0.0
    %102 = vmatprep.subr.mxu0 0.0
    %103 = vmatpush2.msra.mxu0 0.0
    %104 = vmatprep.subr.mxu0 0.0
    %105 = vmatpush2.msra.mxu0 0.0
    %106 = vmatprep.mubr.f32.mxu0 0.0
    %107 = vmatmul.mubr.f32.gmra.mxu0 %v40
    %v108 = vpop.f32.mrf.mxu0
    %v109 = vadd.f32 %v36, %v108
    %v110 = vpop.f32.mrf.mxu0
    %v111 = vadd.f32 %v36, %v110
    %112 = vdwg.mxu0
    %113 = vst [vmem:[#allocation5] sm:$0xff] %v109
    %114 = vst [vmem:[#allocation5 + $0x8] sm:$0xff] %v111
    %s115 = scalar_lea.vmem [#allocation2], 16
    %v116 = vld [vmem:[%s115] sm:$0xff]
    %v117 = vld [vmem:[%s115 + $0x8] sm:$0xff]
    %118 = vmatprep.subr.mxu0 0.0
    %119 = vmatpush1.msra.mxu0 0.0
    %120 = vmatprep.subr.mxu0 0.0
    %121 = vmatpush1.msra.mxu0 0.0
    %122 = vmatprep.subr.mxu0 0.0
    %123 = vmatpush1.msra.mxu0 0.0
    %124 = vmatprep.subr.mxu0 0.0
    %125 = vmatpush1.msra.mxu0 0.0
    %126 = vmatprep.subr.mxu0 0.0
    %127 = vmatpush1.msra.mxu0 0.0
    %128 = vmatprep.subr.mxu0 0.0
    %129 = vmatpush1.msra.mxu0 0.0
    %130 = vmatprep.subr.mxu0 0.0
    %131 = vmatpush1.msra.mxu0 0.0
    %132 = vmatprep.subr.mxu0 0.0
    %133 = vmatpush1.msra.mxu0 0.0
    %134 = vmatprep.subr.mxu0 0.0
    %135 = vmatpush1.msra.mxu0 0.0
    %136 = vmatprep.subr.mxu0 0.0
    %137 = vmatpush1.msra.mxu0 0.0
    %138 = vmatprep.subr.mxu0 0.0
    %139 = vmatpush1.msra.mxu0 0.0
    %140 = vmatprep.subr.mxu0 0.0
    %141 = vmatpush1.msra.mxu0 0.0
    %142 = vmatprep.subr.mxu0 0.0
    %143 = vmatpush1.msra.mxu0 0.0
    %144 = vmatprep.subr.mxu0 0.0
    %145 = vmatpush1.msra.mxu0 0.0
    %146 = vmatprep.subr.mxu0 0.0
    %147 = vmatpush1.msra.mxu0 0.0
    %148 = vmatprep.subr.mxu0 %v117
    %149 = vmatpush1.msra.mxu0 %v116
    %150 = vmatprep.subr.mxu0 0.0
    %151 = vmatpush2.msra.mxu0 0.0
    %152 = vmatprep.subr.mxu0 0.0
    %153 = vmatpush2.msra.mxu0 0.0
    %154 = vmatprep.subr.mxu0 0.0
    %155 = vmatpush2.msra.mxu0 0.0
    %156 = vmatprep.subr.mxu0 0.0
    %157 = vmatpush2.msra.mxu0 0.0
    %158 = vmatprep.subr.mxu0 0.0
    %159 = vmatpush2.msra.mxu0 0.0
    %160 = vmatprep.subr.mxu0 0.0
    %161 = vmatpush2.msra.mxu0 0.0
    %162 = vmatprep.subr.mxu0 0.0
    %163 = vmatpush2.msra.mxu0 0.0
    %164 = vmatprep.subr.mxu0 0.0
    %165 = vmatpush2.msra.mxu0 0.0
    %166 = vmatprep.subr.mxu0 0.0
    %167 = vmatpush2.msra.mxu0 0.0
    %168 = vmatprep.subr.mxu0 0.0
    %169 = vmatpush2.msra.mxu0 0.0
    %170 = vmatprep.subr.mxu0 0.0
    %171 = vmatpush2.msra.mxu0 0.0
    %172 = vmatprep.subr.mxu0 0.0
    %173 = vmatpush2.msra.mxu0 0.0
    %174 = vmatprep.subr.mxu0 0.0
    %175 = vmatpush2.msra.mxu0 0.0
    %176 = vmatprep.subr.mxu0 0.0
    %177 = vmatpush2.msra.mxu0 0.0
    %178 = vmatprep.subr.mxu0 0.0
    %179 = vmatpush2.msra.mxu0 0.0
    %180 = vmatprep.subr.mxu0 0.0
    %181 = vmatpush2.msra.mxu0 0.0
    %182 = vmatprep.mubr.f32.mxu0 0.0
    %183 = vmatmul.mubr.f32.gmra.mxu0 %v40
    %v184 = vpop.f32.mrf.mxu0
    %v185 = vadd.f32 %v36, %v184
    %v186 = vpop.f32.mrf.mxu0
    %v187 = vadd.f32 %v36, %v186
    %188 = vdwg.mxu0
    %s189 = scalar_lea.vmem [#allocation5], 16
    %190 = vst [vmem:[%s189] sm:$0xff] %v185
    %191 = vst [vmem:[%s189 + $0x8] sm:$0xff] %v187
    // Predicated region
    $region18: #{tpu_custom_call.1} parent=1 // pred_check
      _
    $region19: #{tpu_custom_call.1} parent=1 // pred_check_branch
      %193 = sbr.rel (0) target = $region21
    $region20: #{tpu_custom_call.1} parent=1 // pred_region
      %s195 = ssub.s32 512, 512
      %196 = vsyncadd [#allocation4], %s195
      %s197 = sshll.u32 [#allocation5], 4
      %s198 = int_to_ptr.vmem [resolvable:$true] %s197
      %203 = dma.vmem_to_hbm [thread:$0]  %s198, 512, %s3, [#allocation4], 256, 256, 16
    $region21: #{tpu_custom_call.1} parent=1 // pred_fallthru
      _
    // Predicated region
    $region22: #{tpu_custom_call.1} parent=1 // pred_check
      _
    $region23: #{tpu_custom_call.1} parent=1 // pred_check_branch
      %205 = sbr.rel (0) target = $region25
    $region24: #{tpu_custom_call.1} parent=1 // pred_region
      %206 = dma.done [#allocation4], 512
    $region25: #{tpu_custom_call.1} parent=1 // pred_fallthru
      _
    %207 = vsyncpa [#allocation3], 1
    %208 = vsyncpa [#allocation4], 1

</llo_original>
